<compile_context>
chip_gen: v6e
topology: v6e:2x2x1
jax: 0.10.0
libtpu: 0.0.40
codegen_flags: <defaults>
</compile_context>

<pallas_src>
import functools

import numpy as np
import jax
import jax.numpy as jnp
from jax import lax
from jax.experimental import pallas as pl
from jax.experimental.pallas import tpu as pltpu

# Loss weights from DOSLoss.__init__ defaults.
SCALING_WEIGHT = 0.05
CUMSUM_WEIGHT = 0.005
FEATURES_WEIGHT = 0.15


def _dos_loss_kernel(out_ref, scaled_ref, aux_ref, w_ref, loss_ref, *, e_true):
    out = out_ref[...]        # (N, Ep) predicted DOS (zero-padded lanes)
    scaled = scaled_ref[...]  # (N, Ep) target.scaled (zero-padded lanes)
    aux = aux_ref[...]        # (N, 128): [scaling, sf, feat0..feat4, 0...]
    w = w_ref[...]            # (Ep, 128): [valid, x, x^2, x^3, x^4, efw, blk0..blk3, 0...]

    n, e_pad = out.shape
    num_blocks = e_pad // 128
    inv_ne = 1.0 / (n * e_true)

    scaling = aux[:, 0:1]                                # (N, 1)
    diff = out - scaled                                  # 0 in padded lanes
    abs_diff = jnp.abs(diff)
    dos = jnp.abs(out * scaling)                         # 0 in padded lanes

    # ---- One MXU contraction for every cross-lane reduction ----
    #   rows 0..N-1   : dos      -> raw moments s0, m1..m4 and ef_states
    #   rows N..2N-1  : |diff|   -> per-row L1 sums for the DOS loss
    #   rows 2N..3N-1 : diff     -> per-128-lane-block sums (cumsum carries)
    lhs = jnp.concatenate([dos, abs_diff, diff], axis=0)          # (3N, Ep)
    red = jnp.dot(lhs, w, preferred_element_type=jnp.float32)     # (3N, 128)
    mom = red[0:n, :]
    l1d = red[n:2 * n, :]
    blk = red[2 * n:3 * n, :]

    s0 = mom[:, 0:1]
    m1 = mom[:, 1:2]
    m2 = mom[:, 2:3]
    m3 = mom[:, 3:4]
    m4 = mom[:, 4:5]
    ef = mom[:, 5:6]

    # ---- L1 on DOS and on the scaling factor (mean reduction, F.l1_loss) ----
    dos_loss = jnp.sum(l1d[:, 0:1]) * inv_ne
    scaling_loss = jnp.sum(jnp.abs(scaling - aux[:, 1:2])) * (1.0 / n)

    # ---- cumsum L1: cumsum(out) - cumsum(scaled) == cumsum(diff) ----
    # 7-step intra-128-lane Hillis-Steele scan (all rolls with shift < 128),
    # then 3 block-carry adds using the MXU block sums (cols 6..8 of W).
    lane = lax.broadcasted_iota(jnp.int32, (n, e_pad), 1)
    lane_mod = lane & 127
    csum = diff
    shift = 1
    while shift < 128:
        rolled = pltpu.roll(csum, shift, axis=1)   # rolled[:, i] = csum[:, i-shift]
        csum = csum + jnp.where(lane_mod >= shift, rolled, 0.0)
        shift *= 2
    for b in range(num_blocks - 1):
        csum = csum + jnp.where(lane >= (b + 1) * 128, blk[:, 6 + b:7 + b], 0.0)
    valid_abs = jnp.where(lane < e_true, jnp.abs(csum), 0.0)
    cumsum_loss = jnp.sum(valid_abs) * inv_ne

    # ---- DOS features from raw moments of |out * scaling| ----
    # EUP reciprocal + one Newton step (f32-accurate), rsqrt for width**-0.5.
    inv_s0 = pl.reciprocal(s0, approx=True)
    inv_s0 = inv_s0 * (2.0 - s0 * inv_s0)
    c = m1 * inv_s0                                      # center
    r2 = m2 * inv_s0
    r3 = m3 * inv_s0
    r4 = m4 * inv_s0
    c2 = c * c
    width = r2 - c2                                      # 2nd central moment
    mu3 = r3 - 3.0 * c * r2 + 2.0 * c * c2               # 3rd central moment
    mu4 = r4 - 4.0 * c * r3 + 6.0 * c2 * r2 - 3.0 * c2 * c2
    # Clamp before the rsqrt: raw-moment cancellation can push width slightly
    # negative when |center| >> sqrt(width); never NaN (review numerics note).
    width_pos = jnp.maximum(width, 1e-12)
    inv_w = pl.reciprocal(width_pos, approx=True)
    inv_w = inv_w * (2.0 - width_pos * inv_w)
    skew = mu3 * inv_w * lax.rsqrt(width_pos)            # mu3 / width**1.5
    kurt = mu4 * inv_w * inv_w                           # mu4 / width**2

    # target.features live in aux lanes 2..6: [center, width, skew, kurt, ef].
    feat_l1 = (jnp.abs(aux[:, 2:3] - c)
               + jnp.abs(aux[:, 3:4] - width)
               + jnp.abs(aux[:, 4:5] - skew)
               + jnp.abs(aux[:, 5:6] - kurt)
               + jnp.abs(aux[:, 6:7] - ef))
    features_loss = jnp.sum(feat_l1) * (1.0 / (n * 5))

    total = (dos_loss
             + scaling_loss * SCALING_WEIGHT
             + cumsum_loss * CUMSUM_WEIGHT
             + features_loss * FEATURES_WEIGHT)
    # Broadcast to a full tile -> unmasked vst (lane-dense output writeback).
    loss_ref[...] = jnp.full(loss_ref.shape, total, dtype=jnp.float32)


@jax.jit
def dos_loss(out, scaling, target_scaled, target_scaling_factor,
             target_features):
    """JAX/Pallas equivalent of DOSLoss.forward((out, scaling), target)."""
    n, e = out.shape
    e_pad = pl.cdiv(e, 128) * 128                        # 400 -> 512
    f32 = jnp.float32

    # x = torch.linspace(-10, 10, E); zero_index / dx are static constants.
    # TODO(synk): np.argmin tie-break at |x| (indices E/2-1 vs E/2 for even E)
    # is not guaranteed to match torch.argmin; ef window may shift by one bin.
    x_np = np.linspace(-10.0, 10.0, e, dtype=np.float32)
    zero_index = int(np.argmin(np.abs(x_np)))
    dx = float(abs(x_np[0] - x_np[1]))
    lo, hi = max(zero_index - 20, 0), min(zero_index + 20, e)

    # Static MXU weight matrix (baked as an executable constant under jit):
    #   col 0: valid lanes, 1: x, 2: x^2, 3: x^3, 4: x^4, 5: ef-window * dx,
    #   cols 6..: 128-lane block indicators (cumsum carries).
    w_np = np.zeros((e_pad, 128), np.float32)
    w_np[:e, 0] = 1.0
    w_np[:e, 1] = x_np
    w_np[:e, 2] = x_np ** 2
    w_np[:e, 3] = x_np ** 3
    w_np[:e, 4] = x_np ** 4
    w_np[lo:hi, 5] = dx
    for b in range(e_pad // 128):
        w_np[b * 128:(b + 1) * 128, 6 + b] = 1.0
    w = jnp.asarray(w_np)

    # Zero-pad the DOS arrays to a lane-aligned width (single fused pad each).
    pad_e = ((0, 0), (0, e_pad - e))
    out_p = jnp.pad(out.astype(f32), pad_e)
    scaled_p = jnp.pad(target_scaled.astype(f32), pad_e)

    # Merge all narrow side inputs into one lane-padded aux block.
    aux_core = jnp.concatenate(
        [scaling.reshape(n, 1).astype(f32),
         target_scaling_factor.reshape(n, 1).astype(f32),
         target_features.astype(f32)], axis=1)           # (N, 7)
    aux = jnp.pad(aux_core, ((0, 0), (0, 128 - aux_core.shape[1])))

    kernel = functools.partial(_dos_loss_kernel, e_true=e)

    loss = pl.pallas_call(
        kernel,
        out_shape=jax.ShapeDtypeStruct((8, 128), jnp.float32),
        grid=(1,),
        in_specs=[pl.BlockSpec((n, e_pad), lambda i: (0, 0)),   # out (padded)
                  pl.BlockSpec((n, e_pad), lambda i: (0, 0)),   # target.scaled
                  pl.BlockSpec((n, 128), lambda i: (0, 0)),     # aux block
                  pl.BlockSpec((e_pad, 128), lambda i: (0, 0))],  # MXU weights
        out_specs=pl.BlockSpec((8, 128), lambda i: (0, 0)),
        compiler_params=pltpu.CompilerParams(
            dimension_semantics=("arbitrary",)),
    )(out_p, scaled_p, aux, w)
    return loss[0, 0]


def _dos_loss_reference(out, scaling, target_scaled, target_sf, target_features):
    """Pure-JAX reference mirroring the PyTorch module."""
    out = out.astype(jnp.float32)
    target_scaled = target_scaled.astype(jnp.float32)
    n, e = out.shape
    x_np = np.linspace(-10.0, 10.0, e, dtype=np.float32)
    x = jnp.asarray(x_np)
    dos_loss_v = jnp.mean(jnp.abs(out - target_scaled))
    scaling_loss = jnp.mean(jnp.abs(scaling - target_sf))
    cs_loss = jnp.mean(jnp.abs(jnp.cumsum(out, axis=1)
                               - jnp.cumsum(target_scaled, axis=1)))
    dos = jnp.abs(out * scaling[:, None])
    s0 = jnp.sum(dos, axis=1)
    c = jnp.sum(x[None, :] * dos, axis=1) / s0
    xo = x[None, :] - c[:, None]
    width = jnp.sum(xo ** 2 * dos, axis=1) / s0
    skew = jnp.sum(xo ** 3 * dos, axis=1) / s0 / width ** 1.5
    kurt = jnp.sum(xo ** 4 * dos, axis=1) / s0 / width ** 2
    zi = int(np.argmin(np.abs(x_np)))
    dx = float(abs(x_np[0] - x_np[1]))
    ef = jnp.sum(dos[:, zi - 20:zi + 20], axis=1) * dx
    pred = jnp.stack([c, width, skew, kurt, ef], axis=1)
    feat_loss = jnp.mean(jnp.abs(target_features - pred))
    return (dos_loss_v + SCALING_WEIGHT * scaling_loss
            + CUMSUM_WEIGHT * cs_loss + FEATURES_WEIGHT * feat_loss)


if __name__ == "__main__":
    key = jax.random.PRNGKey(0)
    N, E = 8, 400  # forward implies 400 energy points (linspace(-10, 10, 400))
    k1, k2, k3, k4, k5 = jax.random.split(key, 5)

    out = jax.random.uniform(k1, (N, E), jnp.float32)
    scaling = jax.random.uniform(k2, (N,), jnp.float32, minval=0.5, maxval=2.0)
    target_scaled = jax.random.uniform(k3, (N, E), jnp.float32)
    target_scaling_factor = jax.random.uniform(k4, (N,), jnp.float32,
                                               minval=0.5, maxval=2.0)
    target_features = jax.random.normal(k5, (N, 5), jnp.float32)

    loss = dos_loss(out, scaling, target_scaled, target_scaling_factor,
                    target_features)
    jax.block_until_ready(loss)

    ref = _dos_loss_reference(out, scaling, target_scaled,
                              target_scaling_factor, target_features)
    # Tolerance covers the MXU contraction's default (bf16-pass) precision.
    np.testing.assert_allclose(np.asarray(loss), np.asarray(ref),
                               rtol=5e-3, atol=1e-4)
    print("KERNEL_OK")
</pallas_src>

<mosaic_0001>
module attributes {stable_mosaic.version = 11 : i64} {
  func.func @_dos_loss_kernel(%arg0: i32, %arg1: memref<8x512xf32, #tpu.memory_space<vmem>>, %arg2: memref<8x512xf32, #tpu.memory_space<vmem>>, %arg3: memref<8x128xf32, #tpu.memory_space<vmem>>, %arg4: memref<512x128xf32, #tpu.memory_space<vmem>>, %arg5: memref<8x128xf32, #tpu.memory_space<vmem>>) attributes {dimension_semantics = [#tpu.dimension_semantics<arbitrary>], iteration_bounds = array<i64: 1>, scalar_prefetch = 0 : i64, scratch_operands = 0 : i64, tpu.core_type = #tpu.core_type<tc>, window_params = [{pipeline_mode = #tpu.pipeline_mode<synchronous>, transform_indices = @transform_0, window_bounds = array<i64: 8, 512>}, {pipeline_mode = #tpu.pipeline_mode<synchronous>, transform_indices = @transform_1, window_bounds = array<i64: 8, 512>}, {pipeline_mode = #tpu.pipeline_mode<synchronous>, transform_indices = @transform_2, window_bounds = array<i64: 8, 128>}, {pipeline_mode = #tpu.pipeline_mode<synchronous>, transform_indices = @transform_3, window_bounds = array<i64: 512, 128>}, {pipeline_mode = #tpu.pipeline_mode<synchronous>, transform_indices = @transform_4, window_bounds = array<i64: 8, 128>}]} {
    %c0 = arith.constant 0 : index
    %c0_0 = arith.constant 0 : index
    %0 = vector.load %arg1[%c0, %c0_0] : memref<8x512xf32, #tpu.memory_space<vmem>>, vector<8x512xf32>
    %c0_1 = arith.constant 0 : index
    %c0_2 = arith.constant 0 : index
    %1 = vector.load %arg2[%c0_1, %c0_2] : memref<8x512xf32, #tpu.memory_space<vmem>>, vector<8x512xf32>
    %c0_3 = arith.constant 0 : index
    %c0_4 = arith.constant 0 : index
    %2 = vector.load %arg3[%c0_3, %c0_4] : memref<8x128xf32, #tpu.memory_space<vmem>>, vector<8x128xf32>
    %c0_5 = arith.constant 0 : index
    %c0_6 = arith.constant 0 : index
    %3 = vector.load %arg4[%c0_5, %c0_6] : memref<512x128xf32, #tpu.memory_space<vmem>>, vector<512x128xf32>
    %4 = vector.extract_strided_slice %2 {offsets = [0, 0], sizes = [8, 1], strides = [1, 1]} : vector<8x128xf32> to vector<8x1xf32>
    %5 = arith.subf %0, %1 : vector<8x512xf32>
    %6 = math.absf %5 : vector<8x512xf32>
    %7 = vector.broadcast %4 : vector<8x1xf32> to vector<8x512xf32>
    %8 = arith.mulf %0, %7 : vector<8x512xf32>
    %9 = math.absf %8 : vector<8x512xf32>
    %10 = tpu.concatenate %9, %6, %5 in 0 : vector<8x512xf32>, vector<8x512xf32>, vector<8x512xf32> -> vector<24x512xf32>
    %cst = arith.constant dense<0.000000e+00> : vector<24x128xf32>
    %11 = tpu.matmul %10, %3, %cst {dimension_numbers = #tpu.dot_dimension_numbers<[1], [0], [0], [1], [0, 0, 1, 1], [], []>} : vector<24x512xf32>, vector<512x128xf32>, vector<24x128xf32> -> vector<24x128xf32>
    %12 = vector.extract_strided_slice %11 {offsets = [0, 0], sizes = [8, 128], strides = [1, 1]} : vector<24x128xf32> to vector<8x128xf32>
    %13 = vector.extract_strided_slice %11 {offsets = [8, 0], sizes = [8, 128], strides = [1, 1]} : vector<24x128xf32> to vector<8x128xf32>
    %14 = vector.extract_strided_slice %11 {offsets = [16, 0], sizes = [8, 128], strides = [1, 1]} : vector<24x128xf32> to vector<8x128xf32>
    %15 = vector.extract_strided_slice %12 {offsets = [0, 0], sizes = [8, 1], strides = [1, 1]} : vector<8x128xf32> to vector<8x1xf32>
    %16 = vector.extract_strided_slice %12 {offsets = [0, 1], sizes = [8, 1], strides = [1, 1]} : vector<8x128xf32> to vector<8x1xf32>
    %17 = vector.extract_strided_slice %12 {offsets = [0, 2], sizes = [8, 1], strides = [1, 1]} : vector<8x128xf32> to vector<8x1xf32>
    %18 = vector.extract_strided_slice %12 {offsets = [0, 3], sizes = [8, 1], strides = [1, 1]} : vector<8x128xf32> to vector<8x1xf32>
    %19 = vector.extract_strided_slice %12 {offsets = [0, 4], sizes = [8, 1], strides = [1, 1]} : vector<8x128xf32> to vector<8x1xf32>
    %20 = vector.extract_strided_slice %12 {offsets = [0, 5], sizes = [8, 1], strides = [1, 1]} : vector<8x128xf32> to vector<8x1xf32>
    %21 = vector.extract_strided_slice %13 {offsets = [0, 0], sizes = [8, 1], strides = [1, 1]} : vector<8x128xf32> to vector<8x1xf32>
    %22 = vector.shape_cast %21 : vector<8x1xf32> to vector<1x8x1xf32>
    %cst_7 = arith.constant dense<0.000000e+00> : vector<1xf32>
    %23 = vector.multi_reduction <add>, %22, %cst_7 [1, 2] : vector<1x8x1xf32> to vector<1xf32>
    %24 = vector.shape_cast %23 : vector<1xf32> to vector<1x1x1xf32>
    %25 = vector.extract %24[0, 0, 0] : f32 from vector<1x1x1xf32>
    %cst_8 = arith.constant 3.125000e-04 : f32
    %26 = arith.mulf %25, %cst_8 : f32
    %27 = vector.extract_strided_slice %2 {offsets = [0, 1], sizes = [8, 1], strides = [1, 1]} : vector<8x128xf32> to vector<8x1xf32>
    %28 = arith.subf %4, %27 : vector<8x1xf32>
    %29 = math.absf %28 : vector<8x1xf32>
    %30 = vector.shape_cast %29 : vector<8x1xf32> to vector<1x8x1xf32>
    %cst_9 = arith.constant dense<0.000000e+00> : vector<1xf32>
    %31 = vector.multi_reduction <add>, %30, %cst_9 [1, 2] : vector<1x8x1xf32> to vector<1xf32>
    %32 = vector.shape_cast %31 : vector<1xf32> to vector<1x1x1xf32>
    %33 = vector.extract %32[0, 0, 0] : f32 from vector<1x1x1xf32>
    %cst_10 = arith.constant 1.250000e-01 : f32
    %34 = arith.mulf %33, %cst_10 : f32
    %35 = tpu.iota {dimensions = array<i32: 1>} : vector<8x512xi32>
    %c127_i32 = arith.constant 127 : i32
    %36 = vector.broadcast %c127_i32 : i32 to vector<8x512xi32>
    %37 = arith.andi %35, %36 : vector<8x512xi32>
    %c1_i32 = arith.constant 1 : i32
    %38 = tpu.dynamic_rotate %5 by %c1_i32 dim 1 : vector<8x512xf32>, i32 -> vector<8x512xf32>
    %c1_i32_11 = arith.constant 1 : i32
    %39 = vector.broadcast %c1_i32_11 : i32 to vector<8x512xi32>
    %40 = arith.cmpi sge, %37, %39 : vector<8x512xi32>
    %cst_12 = arith.constant 0.000000e+00 : f32
    %41 = vector.broadcast %cst_12 : f32 to vector<8x512xf32>
    %42 = arith.select %40, %38, %41 : vector<8x512xi1>, vector<8x512xf32>
    %43 = arith.addf %5, %42 : vector<8x512xf32>
    %c2_i32 = arith.constant 2 : i32
    %44 = tpu.dynamic_rotate %43 by %c2_i32 dim 1 : vector<8x512xf32>, i32 -> vector<8x512xf32>
    %c2_i32_13 = arith.constant 2 : i32
    %45 = vector.broadcast %c2_i32_13 : i32 to vector<8x512xi32>
    %46 = arith.cmpi sge, %37, %45 : vector<8x512xi32>
    %cst_14 = arith.constant 0.000000e+00 : f32
    %47 = vector.broadcast %cst_14 : f32 to vector<8x512xf32>
    %48 = arith.select %46, %44, %47 : vector<8x512xi1>, vector<8x512xf32>
    %49 = arith.addf %43, %48 : vector<8x512xf32>
    %c4_i32 = arith.constant 4 : i32
    %50 = tpu.dynamic_rotate %49 by %c4_i32 dim 1 : vector<8x512xf32>, i32 -> vector<8x512xf32>
    %c4_i32_15 = arith.constant 4 : i32
    %51 = vector.broadcast %c4_i32_15 : i32 to vector<8x512xi32>
    %52 = arith.cmpi sge, %37, %51 : vector<8x512xi32>
    %cst_16 = arith.constant 0.000000e+00 : f32
    %53 = vector.broadcast %cst_16 : f32 to vector<8x512xf32>
    %54 = arith.select %52, %50, %53 : vector<8x512xi1>, vector<8x512xf32>
    %55 = arith.addf %49, %54 : vector<8x512xf32>
    %c8_i32 = arith.constant 8 : i32
    %56 = tpu.dynamic_rotate %55 by %c8_i32 dim 1 : vector<8x512xf32>, i32 -> vector<8x512xf32>
    %c8_i32_17 = arith.constant 8 : i32
    %57 = vector.broadcast %c8_i32_17 : i32 to vector<8x512xi32>
    %58 = arith.cmpi sge, %37, %57 : vector<8x512xi32>
    %cst_18 = arith.constant 0.000000e+00 : f32
    %59 = vector.broadcast %cst_18 : f32 to vector<8x512xf32>
    %60 = arith.select %58, %56, %59 : vector<8x512xi1>, vector<8x512xf32>
    %61 = arith.addf %55, %60 : vector<8x512xf32>
    %c16_i32 = arith.constant 16 : i32
    %62 = tpu.dynamic_rotate %61 by %c16_i32 dim 1 : vector<8x512xf32>, i32 -> vector<8x512xf32>
    %c16_i32_19 = arith.constant 16 : i32
    %63 = vector.broadcast %c16_i32_19 : i32 to vector<8x512xi32>
    %64 = arith.cmpi sge, %37, %63 : vector<8x512xi32>
    %cst_20 = arith.constant 0.000000e+00 : f32
    %65 = vector.broadcast %cst_20 : f32 to vector<8x512xf32>
    %66 = arith.select %64, %62, %65 : vector<8x512xi1>, vector<8x512xf32>
    %67 = arith.addf %61, %66 : vector<8x512xf32>
    %c32_i32 = arith.constant 32 : i32
    %68 = tpu.dynamic_rotate %67 by %c32_i32 dim 1 : vector<8x512xf32>, i32 -> vector<8x512xf32>
    %c32_i32_21 = arith.constant 32 : i32
    %69 = vector.broadcast %c32_i32_21 : i32 to vector<8x512xi32>
    %70 = arith.cmpi sge, %37, %69 : vector<8x512xi32>
    %cst_22 = arith.constant 0.000000e+00 : f32
    %71 = vector.broadcast %cst_22 : f32 to vector<8x512xf32>
    %72 = arith.select %70, %68, %71 : vector<8x512xi1>, vector<8x512xf32>
    %73 = arith.addf %67, %72 : vector<8x512xf32>
    %c64_i32 = arith.constant 64 : i32
    %74 = tpu.dynamic_rotate %73 by %c64_i32 dim 1 : vector<8x512xf32>, i32 -> vector<8x512xf32>
    %c64_i32_23 = arith.constant 64 : i32
    %75 = vector.broadcast %c64_i32_23 : i32 to vector<8x512xi32>
    %76 = arith.cmpi sge, %37, %75 : vector<8x512xi32>
    %cst_24 = arith.constant 0.000000e+00 : f32
    %77 = vector.broadcast %cst_24 : f32 to vector<8x512xf32>
    %78 = arith.select %76, %74, %77 : vector<8x512xi1>, vector<8x512xf32>
    %79 = arith.addf %73, %78 : vector<8x512xf32>
    %c128_i32 = arith.constant 128 : i32
    %80 = vector.broadcast %c128_i32 : i32 to vector<8x512xi32>
    %81 = arith.cmpi sge, %35, %80 : vector<8x512xi32>
    %82 = vector.extract_strided_slice %14 {offsets = [0, 6], sizes = [8, 1], strides = [1, 1]} : vector<8x128xf32> to vector<8x1xf32>
    %cst_25 = arith.constant 0.000000e+00 : f32
    %83 = vector.shape_cast %82 : vector<8x1xf32> to vector<8x1xf32>
    %84 = vector.broadcast %83 : vector<8x1xf32> to vector<8x512xf32>
    %85 = vector.broadcast %cst_25 : f32 to vector<8x512xf32>
    %86 = arith.select %81, %84, %85 : vector<8x512xi1>, vector<8x512xf32>
    %87 = arith.addf %79, %86 : vector<8x512xf32>
    %c256_i32 = arith.constant 256 : i32
    %88 = vector.broadcast %c256_i32 : i32 to vector<8x512xi32>
    %89 = arith.cmpi sge, %35, %88 : vector<8x512xi32>
    %90 = vector.extract_strided_slice %14 {offsets = [0, 7], sizes = [8, 1], strides = [1, 1]} : vector<8x128xf32> to vector<8x1xf32>
    %cst_26 = arith.constant 0.000000e+00 : f32
    %91 = vector.shape_cast %90 : vector<8x1xf32> to vector<8x1xf32>
    %92 = vector.broadcast %91 : vector<8x1xf32> to vector<8x512xf32>
    %93 = vector.broadcast %cst_26 : f32 to vector<8x512xf32>
    %94 = arith.select %89, %92, %93 : vector<8x512xi1>, vector<8x512xf32>
    %95 = arith.addf %87, %94 : vector<8x512xf32>
    %c384_i32 = arith.constant 384 : i32
    %96 = vector.broadcast %c384_i32 : i32 to vector<8x512xi32>
    %97 = arith.cmpi sge, %35, %96 : vector<8x512xi32>
    %98 = vector.extract_strided_slice %14 {offsets = [0, 8], sizes = [8, 1], strides = [1, 1]} : vector<8x128xf32> to vector<8x1xf32>
    %cst_27 = arith.constant 0.000000e+00 : f32
    %99 = vector.shape_cast %98 : vector<8x1xf32> to vector<8x1xf32>
    %100 = vector.broadcast %99 : vector<8x1xf32> to vector<8x512xf32>
    %101 = vector.broadcast %cst_27 : f32 to vector<8x512xf32>
    %102 = arith.select %97, %100, %101 : vector<8x512xi1>, vector<8x512xf32>
    %103 = arith.addf %95, %102 : vector<8x512xf32>
    %c400_i32 = arith.constant 400 : i32
    %104 = vector.broadcast %c400_i32 : i32 to vector<8x512xi32>
    %105 = arith.cmpi slt, %35, %104 : vector<8x512xi32>
    %106 = math.absf %103 : vector<8x512xf32>
    %cst_28 = arith.constant 0.000000e+00 : f32
    %107 = vector.broadcast %cst_28 : f32 to vector<8x512xf32>
    %108 = arith.select %105, %106, %107 : vector<8x512xi1>, vector<8x512xf32>
    %109 = vector.shape_cast %108 : vector<8x512xf32> to vector<1x8x512xf32>
    %cst_29 = arith.constant dense<0.000000e+00> : vector<1xf32>
    %110 = vector.multi_reduction <add>, %109, %cst_29 [1, 2] : vector<1x8x512xf32> to vector<1xf32>
    %111 = vector.shape_cast %110 : vector<1xf32> to vector<1x1x1xf32>
    %112 = vector.extract %111[0, 0, 0] : f32 from vector<1x1x1xf32>
    %cst_30 = arith.constant 3.125000e-04 : f32
    %113 = arith.mulf %112, %cst_30 : f32
    %114 = tpu.reciprocal %15 {approx = true} : vector<8x1xf32> -> vector<8x1xf32>
    %115 = arith.mulf %15, %114 : vector<8x1xf32>
    %cst_31 = arith.constant 2.000000e+00 : f32
    %116 = vector.broadcast %cst_31 : f32 to vector<8x1xf32>
    %117 = arith.subf %116, %115 : vector<8x1xf32>
    %118 = arith.mulf %114, %117 : vector<8x1xf32>
    %119 = arith.mulf %16, %118 : vector<8x1xf32>
    %120 = arith.mulf %17, %118 : vector<8x1xf32>
    %121 = arith.mulf %18, %118 : vector<8x1xf32>
    %122 = arith.mulf %19, %118 : vector<8x1xf32>
    %123 = arith.mulf %119, %119 : vector<8x1xf32>
    %124 = arith.subf %120, %123 : vector<8x1xf32>
    %cst_32 = arith.constant 3.000000e+00 : f32
    %125 = vector.broadcast %cst_32 : f32 to vector<8x1xf32>
    %126 = arith.mulf %125, %119 : vector<8x1xf32>
    %127 = arith.mulf %126, %120 : vector<8x1xf32>
    %128 = arith.subf %121, %127 : vector<8x1xf32>
    %cst_33 = arith.constant 2.000000e+00 : f32
    %129 = vector.broadcast %cst_33 : f32 to vector<8x1xf32>
    %130 = arith.mulf %129, %119 : vector<8x1xf32>
    %131 = arith.mulf %130, %123 : vector<8x1xf32>
    %132 = arith.addf %128, %131 : vector<8x1xf32>
    %cst_34 = arith.constant 4.000000e+00 : f32
    %133 = vector.broadcast %cst_34 : f32 to vector<8x1xf32>
    %134 = arith.mulf %133, %119 : vector<8x1xf32>
    %135 = arith.mulf %134, %121 : vector<8x1xf32>
    %136 = arith.subf %122, %135 : vector<8x1xf32>
    %cst_35 = arith.constant 6.000000e+00 : f32
    %137 = vector.broadcast %cst_35 : f32 to vector<8x1xf32>
    %138 = arith.mulf %137, %123 : vector<8x1xf32>
    %139 = arith.mulf %138, %120 : vector<8x1xf32>
    %140 = arith.addf %136, %139 : vector<8x1xf32>
    %cst_36 = arith.constant 3.000000e+00 : f32
    %141 = vector.broadcast %cst_36 : f32 to vector<8x1xf32>
    %142 = arith.mulf %141, %123 : vector<8x1xf32>
    %143 = arith.mulf %142, %123 : vector<8x1xf32>
    %144 = arith.subf %140, %143 : vector<8x1xf32>
    %cst_37 = arith.constant 9.99999996E-13 : f32
    %145 = vector.broadcast %cst_37 : f32 to vector<8x1xf32>
    %146 = arith.maximumf %124, %145 : vector<8x1xf32>
    %147 = tpu.reciprocal %146 {approx = true} : vector<8x1xf32> -> vector<8x1xf32>
    %148 = arith.mulf %146, %147 : vector<8x1xf32>
    %cst_38 = arith.constant 2.000000e+00 : f32
    %149 = vector.broadcast %cst_38 : f32 to vector<8x1xf32>
    %150 = arith.subf %149, %148 : vector<8x1xf32>
    %151 = arith.mulf %147, %150 : vector<8x1xf32>
    %152 = arith.mulf %132, %151 : vector<8x1xf32>
    %153 = math.rsqrt %146 : vector<8x1xf32>
    %154 = arith.mulf %152, %153 : vector<8x1xf32>
    %155 = arith.mulf %144, %151 : vector<8x1xf32>
    %156 = arith.mulf %155, %151 : vector<8x1xf32>
    %157 = vector.extract_strided_slice %2 {offsets = [0, 2], sizes = [8, 1], strides = [1, 1]} : vector<8x128xf32> to vector<8x1xf32>
    %158 = arith.subf %157, %119 : vector<8x1xf32>
    %159 = math.absf %158 : vector<8x1xf32>
    %160 = vector.extract_strided_slice %2 {offsets = [0, 3], sizes = [8, 1], strides = [1, 1]} : vector<8x128xf32> to vector<8x1xf32>
    %161 = arith.subf %160, %124 : vector<8x1xf32>
    %162 = math.absf %161 : vector<8x1xf32>
    %163 = arith.addf %159, %162 : vector<8x1xf32>
    %164 = vector.extract_strided_slice %2 {offsets = [0, 4], sizes = [8, 1], strides = [1, 1]} : vector<8x128xf32> to vector<8x1xf32>
    %165 = arith.subf %164, %154 : vector<8x1xf32>
    %166 = math.absf %165 : vector<8x1xf32>
    %167 = arith.addf %163, %166 : vector<8x1xf32>
    %168 = vector.extract_strided_slice %2 {offsets = [0, 5], sizes = [8, 1], strides = [1, 1]} : vector<8x128xf32> to vector<8x1xf32>
    %169 = arith.subf %168, %156 : vector<8x1xf32>
    %170 = math.absf %169 : vector<8x1xf32>
    %171 = arith.addf %167, %170 : vector<8x1xf32>
    %172 = vector.extract_strided_slice %2 {offsets = [0, 6], sizes = [8, 1], strides = [1, 1]} : vector<8x128xf32> to vector<8x1xf32>
    %173 = arith.subf %172, %20 : vector<8x1xf32>
    %174 = math.absf %173 : vector<8x1xf32>
    %175 = arith.addf %171, %174 : vector<8x1xf32>
    %176 = vector.shape_cast %175 : vector<8x1xf32> to vector<1x8x1xf32>
    %cst_39 = arith.constant dense<0.000000e+00> : vector<1xf32>
    %177 = vector.multi_reduction <add>, %176, %cst_39 [1, 2] : vector<1x8x1xf32> to vector<1xf32>
    %178 = vector.shape_cast %177 : vector<1xf32> to vector<1x1x1xf32>
    %179 = vector.extract %178[0, 0, 0] : f32 from vector<1x1x1xf32>
    %cst_40 = arith.constant 2.500000e-02 : f32
    %180 = arith.mulf %179, %cst_40 : f32
    %cst_41 = arith.constant 5.000000e-02 : f32
    %181 = arith.mulf %34, %cst_41 : f32
    %182 = arith.addf %26, %181 : f32
    %cst_42 = arith.constant 5.000000e-03 : f32
    %183 = arith.mulf %113, %cst_42 : f32
    %184 = arith.addf %182, %183 : f32
    %cst_43 = arith.constant 1.500000e-01 : f32
    %185 = arith.mulf %180, %cst_43 : f32
    %186 = arith.addf %184, %185 : f32
    %187 = vector.broadcast %186 : f32 to vector<8x128xf32>
    %c0_44 = arith.constant 0 : index
    %c0_45 = arith.constant 0 : index
    %188 = vector.load %arg5[%c0_44, %c0_45] : memref<8x128xf32, #tpu.memory_space<vmem>>, vector<8x128xf32>
    tpu.vector_store %arg5[%c0_44, %c0_45], %187 {strides = array<i32>} : memref<8x128xf32, #tpu.memory_space<vmem>>, vector<8x128xf32>,
    return
  }
  func.func @transform_0(%arg0: i32) -> (i32, i32) {
    %c0_i32 = arith.constant 0 : i32
    %c0_i32_0 = arith.constant 0 : i32
    %c0_i32_1 = arith.constant 0 : i32
    return %c0_i32, %c0_i32_0 : i32, i32
  }
  func.func @transform_1(%arg0: i32) -> (i32, i32) {
    %c0_i32 = arith.constant 0 : i32
    %c0_i32_0 = arith.constant 0 : i32
    %c0_i32_1 = arith.constant 0 : i32
    return %c0_i32, %c0_i32_0 : i32, i32
  }
  func.func @transform_2(%arg0: i32) -> (i32, i32) {
    %c0_i32 = arith.constant 0 : i32
    %c0_i32_0 = arith.constant 0 : i32
    %c0_i32_1 = arith.constant 0 : i32
    return %c0_i32, %c0_i32_0 : i32, i32
  }
  func.func @transform_3(%arg0: i32) -> (i32, i32) {
    %c0_i32 = arith.constant 0 : i32
    %c0_i32_0 = arith.constant 0 : i32
    %c0_i32_1 = arith.constant 0 : i32
    return %c0_i32, %c0_i32_0 : i32, i32
  }
  func.func @transform_4(%arg0: i32) -> (i32, i32) {
    %c0_i32 = arith.constant 0 : i32
    %c0_i32_0 = arith.constant 0 : i32
    %c0_i32_1 = arith.constant 0 : i32
    return %c0_i32, %c0_i32_0 : i32, i32
  }
}

</mosaic_0001>

<llo_original>
// kernel: dos_loss.1
$region0: #{dos_loss.1}
  #allocation0 [shape = 'u32[]', space=smem, size = 0x4, offset = 0x4, fixed_abs, tag = 'smem constant byte address 0x4 - core index']
  #allocation1 [shape = 'u32[144,128]{1,0:T(1,128)}', space=vmem, size = 0x12000, scoped, tag = 'internal scratch']
  %s0 = inlined_call_operand.vmem [shape: f32[8,512], index: 0, kind: input, shape index: {}]
  %s1 = inlined_call_operand.vmem [shape: f32[8,512], index: 1, kind: input, shape index: {}]
  %s2 = inlined_call_operand.vmem [shape: f32[8,128], index: 2, kind: input, shape index: {}]
  %s3 = inlined_call_operand.hbm [shape: f32[512,128], index: 3, kind: input, shape index: {}]
  %s4 = inlined_call_operand.vmem [shape: f32[8,128], index: 4, kind: output, shape index: {}]
  %s5 = sld [smem:[#allocation0]]
  $region30: #{dos_loss.1} parent=0
    _
  %s7 = ssub.s32 1, %s5
  %s8 = scalar_select 0, %s7, %s5
  $region1: #{dos_loss.1} parent=0
    #allocation2 [shape = 'u8[262144]{0}', space=vmem, size = 0x40000, scoped, tag = 'input window, operand 3, single buffered']
    #allocation3 [shape = 's32[1]{0}', space=sflag, size = 0x4, scoped, tag = 'scoped memory for dos_loss.1']
    %9 = vsyncpa [#allocation3], 0
    // Predicated region
    $region2: #{dos_loss.1} parent=1 // pred_check
      _
    $region3: #{dos_loss.1} parent=1 // pred_check_branch
      %11 = sbr.rel (0) target = $region5
    $region4: #{dos_loss.1} parent=1 // pred_region
      _
    $region5: #{dos_loss.1} parent=1 // pred_fallthru
      _
    // Predicated region
    $region6: #{dos_loss.1} parent=1 // pred_check
      _
    $region7: #{dos_loss.1} parent=1 // pred_check_branch
      %13 = sbr.rel (0) target = $region9
    $region8: #{dos_loss.1} parent=1 // pred_region
      _
    $region9: #{dos_loss.1} parent=1 // pred_fallthru
      _
    // Predicated region
    $region10: #{dos_loss.1} parent=1 // pred_check
      _
    $region11: #{dos_loss.1} parent=1 // pred_check_branch
      %15 = sbr.rel (0) target = $region13
    $region12: #{dos_loss.1} parent=1 // pred_region
      _
    $region13: #{dos_loss.1} parent=1 // pred_fallthru
      _
    // Predicated region
    $region14: #{dos_loss.1} parent=1 // pred_check
      _
    $region15: #{dos_loss.1} parent=1 // pred_check_branch
      %17 = sbr.rel (0) target = $region17
    $region16: #{dos_loss.1} parent=1 // pred_region
      %s19 = ssub.s32 8192, 8192
      %20 = vsyncadd [#allocation3], %s19
      %s21 = sshll.u32 [#allocation2], 4
      %s22 = int_to_ptr.vmem [resolvable:$true] %s21
      %27 = dma.hbm_to_vmem [thread:$0]  %s3, 8192, %s22, [#allocation3], 128, 128, 8
    $region17: #{dos_loss.1} parent=1 // pred_fallthru
      _
    // Predicated region
    $region18: #{dos_loss.1} parent=1 // pred_check
      _
    $region19: #{dos_loss.1} parent=1 // pred_check_branch
      %29 = sbr.rel (0) target = $region21
    $region20: #{dos_loss.1} parent=1 // pred_region
      %30 = dma.done [#allocation3], 8192
    $region21: #{dos_loss.1} parent=1 // pred_fallthru
      _
    %v31 = vld [vmem:[%s0] sm:$0xff]
    %v32 = vld [vmem:[%s0 + $0x8] sm:$0xff]
    %v33 = vld [vmem:[%s0 + $0x10] sm:$0xff]
    %v34 = vld [vmem:[%s0 + $0x18] sm:$0xff]
    %v35 = vld [vmem:[%s1] sm:$0xff]
    %v36 = vld [vmem:[%s1 + $0x8] sm:$0xff]
    %v37 = vld [vmem:[%s1 + $0x10] sm:$0xff]
    %v38 = vld [vmem:[%s1 + $0x18] sm:$0xff]
    %v39 = vld [vmem:[%s2] sm:$0xff]
    %v40 = vld [vmem:[#allocation2] sm:$0xff]
    %v41 = vld [vmem:[#allocation2 + $0x8] sm:$0xff]
    %v42 = vld [vmem:[#allocation2 + $0x10] sm:$0xff]
    %v43 = vld [vmem:[#allocation2 + $0x18] sm:$0xff]
    %v44 = vld [vmem:[#allocation2 + $0x20] sm:$0xff]
    %v45 = vld [vmem:[#allocation2 + $0x28] sm:$0xff]
    %v46 = vld [vmem:[#allocation2 + $0x30] sm:$0xff]
    %v47 = vld [vmem:[#allocation2 + $0x38] sm:$0xff]
    %v48 = vld [vmem:[#allocation2 + $0x40] sm:$0xff]
    %v49 = vld [vmem:[#allocation2 + $0x48] sm:$0xff]
    %v50 = vld [vmem:[#allocation2 + $0x50] sm:$0xff]
    %v51 = vld [vmem:[#allocation2 + $0x58] sm:$0xff]
    %v52 = vld [vmem:[#allocation2 + $0x60] sm:$0xff]
    %v53 = vld [vmem:[#allocation2 + $0x68] sm:$0xff]
    %v54 = vld [vmem:[#allocation2 + $0x70] sm:$0xff]
    %v55 = vld [vmem:[#allocation2 + $0x78] sm:$0xff]
    %v56 = vld [vmem:[#allocation2 + $0x80] sm:$0xff]
    %v57 = vld [vmem:[#allocation2 + $0x88] sm:$0xff]
    %v58 = vld [vmem:[#allocation2 + $0x90] sm:$0xff]
    %v59 = vld [vmem:[#allocation2 + $0x98] sm:$0xff]
    %v60 = vld [vmem:[#allocation2 + $0xa0] sm:$0xff]
    %v61 = vld [vmem:[#allocation2 + $0xa8] sm:$0xff]
    %v62 = vld [vmem:[#allocation2 + $0xb0] sm:$0xff]
    %v63 = vld [vmem:[#allocation2 + $0xb8] sm:$0xff]
    %v64 = vld [vmem:[#allocation2 + $0xc0] sm:$0xff]
    %v65 = vld [vmem:[#allocation2 + $0xc8] sm:$0xff]
    %v66 = vld [vmem:[#allocation2 + $0xd0] sm:$0xff]
    %v67 = vld [vmem:[#allocation2 + $0xd8] sm:$0xff]
    %v68 = vld [vmem:[#allocation2 + $0xe0] sm:$0xff]
    %v69 = vld [vmem:[#allocation2 + $0xe8] sm:$0xff]
    %v70 = vld [vmem:[#allocation2 + $0xf0] sm:$0xff]
    %v71 = vld [vmem:[#allocation2 + $0xf8] sm:$0xff]
    %v72 = vld [vmem:[#allocation2 + $0x100] sm:$0xff]
    %v73 = vld [vmem:[#allocation2 + $0x108] sm:$0xff]
    %v74 = vld [vmem:[#allocation2 + $0x110] sm:$0xff]
    %v75 = vld [vmem:[#allocation2 + $0x118] sm:$0xff]
    %v76 = vld [vmem:[#allocation2 + $0x120] sm:$0xff]
    %v77 = vld [vmem:[#allocation2 + $0x128] sm:$0xff]
    %v78 = vld [vmem:[#allocation2 + $0x130] sm:$0xff]
    %v79 = vld [vmem:[#allocation2 + $0x138] sm:$0xff]
    %v80 = vld [vmem:[#allocation2 + $0x140] sm:$0xff]
    %v81 = vld [vmem:[#allocation2 + $0x148] sm:$0xff]
    %v82 = vld [vmem:[#allocation2 + $0x150] sm:$0xff]
    %v83 = vld [vmem:[#allocation2 + $0x158] sm:$0xff]
    %v84 = vld [vmem:[#allocation2 + $0x160] sm:$0xff]
    %v85 = vld [vmem:[#allocation2 + $0x168] sm:$0xff]
    %v86 = vld [vmem:[#allocation2 + $0x170] sm:$0xff]
    %v87 = vld [vmem:[#allocation2 + $0x178] sm:$0xff]
    %v88 = vld [vmem:[#allocation2 + $0x180] sm:$0xff]
    %v89 = vld [vmem:[#allocation2 + $0x188] sm:$0xff]
    %v90 = vld [vmem:[#allocation2 + $0x190] sm:$0xff]
    %v91 = vld [vmem:[#allocation2 + $0x198] sm:$0xff]
    %v92 = vld [vmem:[#allocation2 + $0x1a0] sm:$0xff]
    %v93 = vld [vmem:[#allocation2 + $0x1a8] sm:$0xff]
    %v94 = vld [vmem:[#allocation2 + $0x1b0] sm:$0xff]
    %v95 = vld [vmem:[#allocation2 + $0x1b8] sm:$0xff]
    %v96 = vld [vmem:[#allocation2 + $0x1c0] sm:$0xff]
    %v97 = vld [vmem:[#allocation2 + $0x1c8] sm:$0xff]
    %v98 = vld [vmem:[#allocation2 + $0x1d0] sm:$0xff]
    %v99 = vld [vmem:[#allocation2 + $0x1d8] sm:$0xff]
    %v100 = vld [vmem:[#allocation2 + $0x1e0] sm:$0xff]
    %v101 = vld [vmem:[#allocation2 + $0x1e8] sm:$0xff]
    %v102 = vld [vmem:[#allocation2 + $0x1f0] sm:$0xff]
    %v103 = vld [vmem:[#allocation2 + $0x1f8] sm:$0xff]
    %v104 = vsub.f32 %v31, %v35
    %v105 = vsub.f32 %v32, %v36
    %v106 = vsub.f32 %v33, %v37
    %v107 = vsub.f32 %v34, %v38
    %v108 = vand.u32 2147483647, %v104
    %v109 = vand.u32 2147483647, %v105
    %v110 = vand.u32 2147483647, %v106
    %v111 = vand.u32 2147483647, %v107
    %113 = vset.pattern.permute.xlu0 0
    %114 = vperm.xlu0 %113, %v39
    %v115 = vpop.permute.xlu0 %114
    %v117 = vmul.f32 %v31, %v115
    %v118 = vmul.f32 %v32, %v115
    %v119 = vmul.f32 %v33, %v115
    %v120 = vmul.f32 %v34, %v115
    %v121 = vand.u32 2147483647, %v117
    %v122 = vand.u32 2147483647, %v118
    %v123 = vand.u32 2147483647, %v119
    %v124 = vand.u32 2147483647, %v120
    %125 = vmatprep.subr.mxu0 0.0
    %126 = vmatpush1.msra.mxu0 %v55
    %127 = vmatprep.subr.mxu0 0.0
    %128 = vmatpush1.msra.mxu0 %v54
    %129 = vmatprep.subr.mxu0 0.0
    %130 = vmatpush1.msra.mxu0 %v53
    %131 = vmatprep.subr.mxu0 0.0
    %132 = vmatpush1.msra.mxu0 %v52
    %133 = vmatprep.subr.mxu0 0.0
    %134 = vmatpush1.msra.mxu0 %v51
    %135 = vmatprep.subr.mxu0 0.0
    %136 = vmatpush1.msra.mxu0 %v50
    %137 = vmatprep.subr.mxu0 0.0
    %138 = vmatpush1.msra.mxu0 %v49
    %139 = vmatprep.subr.mxu0 0.0
    %140 = vmatpush1.msra.mxu0 %v48
    %141 = vmatprep.subr.mxu0 0.0
    %142 = vmatpush1.msra.mxu0 %v47
    %143 = vmatprep.subr.mxu0 0.0
    %144 = vmatpush1.msra.mxu0 %v46
    %145 = vmatprep.subr.mxu0 0.0
    %146 = vmatpush1.msra.mxu0 %v45
    %147 = vmatprep.subr.mxu0 0.0
    %148 = vmatpush1.msra.mxu0 %v44
    %149 = vmatprep.subr.mxu0 0.0
    %150 = vmatpush1.msra.mxu0 %v43
    %151 = vmatprep.subr.mxu0 0.0
    %152 = vmatpush1.msra.mxu0 %v42
    %153 = vmatprep.subr.mxu0 0.0
    %154 = vmatpush1.msra.mxu0 %v41
    %155 = vmatprep.subr.mxu0 0.0
    %156 = vmatpush1.msra.mxu0 %v40
    %157 = vmatprep.subr.mxu0 0.0
    %158 = vmatpush2.msra.mxu0 %v71
    %159 = vmatprep.subr.mxu0 0.0
    %160 = vmatpush2.msra.mxu0 %v70
    %161 = vmatprep.subr.mxu0 0.0
    %162 = vmatpush2.msra.mxu0 %v69
    %163 = vmatprep.subr.mxu0 0.0
    %164 = vmatpush2.msra.mxu0 %v68
    %165 = vmatprep.subr.mxu0 0.0
    %166 = vmatpush2.msra.mxu0 %v67
    %167 = vmatprep.subr.mxu0 0.0
    %168 = vmatpush2.msra.mxu0 %v66
    %169 = vmatprep.subr.mxu0 0.0
    %170 = vmatpush2.msra.mxu0 %v65
    %171 = vmatprep.subr.mxu0 0.0
    %172 = vmatpush2.msra.mxu0 %v64
    %173 = vmatprep.subr.mxu0 0.0
    %174 = vmatpush2.msra.mxu0 %v63
    %175 = vmatprep.subr.mxu0 0.0
    %176 = vmatpush2.msra.mxu0 %v62
    %177 = vmatprep.subr.mxu0 0.0
    %178 = vmatpush2.msra.mxu0 %v61
    %179 = vmatprep.subr.mxu0 0.0
    %180 = vmatpush2.msra.mxu0 %v60
    %181 = vmatprep.subr.mxu0 0.0
    %182 = vmatpush2.msra.mxu0 %v59
    %183 = vmatprep.subr.mxu0 0.0
    %184 = vmatpush2.msra.mxu0 %v58
    %185 = vmatprep.subr.mxu0 0.0
    %186 = vmatpush2.msra.mxu0 %v57
    %187 = vmatprep.subr.mxu0 0.0
    %188 = vmatpush2.msra.mxu0 %v56
    %189 = vmatprep.mubr.f32.mxu0 %v122
    %190 = vmatmul.mubr.f32.gmra.mxu0 %v121
    %v191 = vpop.f32.mrf.mxu0
    %v192 = vadd.f32 0.0, %v191
    %v193 = vpop.f32.mrf.mxu0
    %194 = vmatprep.mubr.f32.mxu0 %v109
    %195 = vmatmul.mubr.f32.gmra.mxu0 %v108
    %v196 = vpop.f32.mrf.mxu0
    %v197 = vadd.f32 0.0, %v196
    %v198 = vpop.f32.mrf.mxu0
    %199 = vmatprep.mubr.f32.mxu0 %v105
    %200 = vmatmul.mubr.f32.gmra.mxu0 %v104
    %v201 = vpop.f32.mrf.mxu0
    %v202 = vadd.f32 0.0, %v201
    %v203 = vpop.f32.mrf.mxu0
    %204 = vdwg.mxu0
    %205 = vmatprep.subr.mxu0 0.0
    %206 = vmatpush1.msra.mxu0 %v87
    %207 = vmatprep.subr.mxu0 0.0
    %208 = vmatpush1.msra.mxu0 %v86
    %209 = vmatprep.subr.mxu0 0.0
    %210 = vmatpush1.msra.mxu0 %v85
    %211 = vmatprep.subr.mxu0 0.0
    %212 = vmatpush1.msra.mxu0 %v84
    %213 = vmatprep.subr.mxu0 0.0
    %214 = vmatpush1.msra.mxu0 %v83
    %215 = vmatprep.subr.mxu0 0.0
    %216 = vmatpush1.msra.mxu0 %v82
    %217 = vmatprep.subr.mxu0 0.0
    %218 = vmatpush1.msra.mxu0 %v81
    %219 = vmatprep.subr.mxu0 0.0
    %220 = vmatpush1.msra.mxu0 %v80
    %221 = vmatprep.subr.mxu0 0.0
    %222 = vmatpush1.msra.mxu0 %v79
    %223 = vmatprep.subr.mxu0 0.0
    %224 = vmatpush1.msra.mxu0 %v78
    %225 = vmatprep.subr.mxu0 0.0
    %226 = vmatpush1.msra.mxu0 %v77
    %227 = vmatprep.subr.mxu0 0.0
    %228 = vmatpush1.msra.mxu0 %v76
    %229 = vmatprep.subr.mxu0 0.0
    %230 = vmatpush1.msra.mxu0 %v75
    %231 = vmatprep.subr.mxu0 0.0
    %232 = vmatpush1.msra.mxu0 %v74
    %233 = vmatprep.subr.mxu0 0.0
    %234 = vmatpush1.msra.mxu0 %v73
    %235 = vmatprep.subr.mxu0 0.0
    %236 = vmatpush1.msra.mxu0 %v72
    %237 = vmatprep.subr.mxu0 0.0
    %238 = vmatpush2.msra.mxu0 %v103
    %239 = vmatprep.subr.mxu0 0.0
    %240 = vmatpush2.msra.mxu0 %v102
    %241 = vmatprep.subr.mxu0 0.0
    %242 = vmatpush2.msra.mxu0 %v101
    %243 = vmatprep.subr.mxu0 0.0
    %244 = vmatpush2.msra.mxu0 %v100
    %245 = vmatprep.subr.mxu0 0.0
    %246 = vmatpush2.msra.mxu0 %v99
    %247 = vmatprep.subr.mxu0 0.0
    %248 = vmatpush2.msra.mxu0 %v98
    %249 = vmatprep.subr.mxu0 0.0
    %250 = vmatpush2.msra.mxu0 %v97
    %251 = vmatprep.subr.mxu0 0.0
    %252 = vmatpush2.msra.mxu0 %v96
    %253 = vmatprep.subr.mxu0 0.0
    %254 = vmatpush2.msra.mxu0 %v95
    %255 = vmatprep.subr.mxu0 0.0
    %256 = vmatpush2.msra.mxu0 %v94
    %257 = vmatprep.subr.mxu0 0.0
    %258 = vmatpush2.msra.mxu0 %v93
    %259 = vmatprep.subr.mxu0 0.0
    %260 = vmatpush2.msra.mxu0 %v92
    %261 = vmatprep.subr.mxu0 0.0
    %262 = vmatpush2.msra.mxu0 %v91
    %263 = vmatprep.subr.mxu0 0.0
    %264 = vmatpush2.msra.mxu0 %v90
    %265 = vmatprep.subr.mxu0 0.0
    %266 = vmatpush2.msra.mxu0 %v89
    %267 = vmatprep.subr.mxu0 0.0
    %268 = vmatpush2.msra.mxu0 %v88
    %269 = vmatprep.mubr.f32.mxu0 %v124
    %270 = vmatmul.mubr.f32.gmra.mxu0 %v123
    %v271 = vpop.f32.mrf.mxu0
    %v272 = vadd.f32 %v192, %v271
    %v273 = vpop.f32.mrf.mxu0
    %274 = vmatprep.mubr.f32.mxu0 %v111
    %275 = vmatmul.mubr.f32.gmra.mxu0 %v110
    %v276 = vpop.f32.mrf.mxu0
    %v277 = vadd.f32 %v197, %v276
    %v278 = vpop.f32.mrf.mxu0
    %279 = vmatprep.mubr.f32.mxu0 %v107
    %280 = vmatmul.mubr.f32.gmra.mxu0 %v106
    %v281 = vpop.f32.mrf.mxu0
    %v282 = vadd.f32 %v202, %v281
    %v283 = vpop.f32.mrf.mxu0
    %284 = vdwg.mxu0
    %vm285 = vcmask 7168
    %v286 = vsel %vm285, %v277, 0.0
    %287 = vadd.xlane.f32.xlu0 %v286
    %v288 = vpop.xlane.xlu0 %287
    %v289 = vrot.slane %v288, 4
    %v290 = vadd.f32 %v288, %v289
    %v291 = vrot.slane %v290, 2
    %v292 = vadd.f32 %v290, %v291
    %v293 = vrot.slane %v292, 1
    %v294 = vadd.f32 %v292, %v293
    %s295 = vtos %v294
    %s296 = smul.f32 %s295, 0.0003125
    %297 = vrot.lane.b32.xlu0 %v39, 127
    %v298 = vpop.permute.xlu0 %297
    %v300 = vsub.f32 %v39, %v298
    %v301 = vand.u32 2147483647, %v300
    %v302 = vsel %vm285, %v301, 0.0
    %303 = vadd.xlane.f32.xlu0 %v302
    %v304 = vpop.xlane.xlu0 %303
    %v305 = vrot.slane %v304, 4
    %v306 = vadd.f32 %v304, %v305
    %v307 = vrot.slane %v306, 2
    %v308 = vadd.f32 %v306, %v307
    %v309 = vrot.slane %v308, 1
    %v310 = vadd.f32 %v308, %v309
    %s311 = vtos %v310
    %s312 = smul.f32 %s311, 0.125
    %v313 = vlaneseq
    %v314 = vand.u32 %v313, 127
    %v315 = vadd.s32 %v314, 128
    %v316 = vadd.s32 %v314, 256
    %v317 = vadd.s32 %v314, 384
    %v318 = vand.u32 %v314, 127
    %v319 = vand.u32 %v315, 127
    %v320 = vand.u32 %v316, 127
    %v321 = vand.u32 %v317, 127
    %322 = vrot.lane.b32.xlu0 %v104, 1
    %v323 = vpop.permute.xlu0 %322
    %324 = vrot.lane.b32.xlu0 %v105, 1
    %v325 = vpop.permute.xlu0 %324
    %326 = vrot.lane.b32.xlu0 %v106, 1
    %v327 = vpop.permute.xlu0 %326
    %328 = vrot.lane.b32.xlu0 %v107, 1
    %v329 = vpop.permute.xlu0 %328
    %vm330 = vcmp.lt.s32.totalorder %v314, 1
    %v331 = vsel %vm330, %v327, %v329
    %v332 = vsel %vm330, %v325, %v327
    %v333 = vsel %vm330, %v323, %v325
    %v334 = vsel %vm330, %v329, %v323
    %vm335 = vcmp.ge.s32.totalorder %v318, 1
    %vm336 = vcmp.ge.s32.totalorder %v319, 1
    %vm337 = vcmp.ge.s32.totalorder %v320, 1
    %vm338 = vcmp.ge.s32.totalorder %v321, 1
    %v339 = vsel %vm335, %v334, 0.0
    %v340 = vsel %vm336, %v333, 0.0
    %v341 = vsel %vm337, %v332, 0.0
    %v342 = vsel %vm338, %v331, 0.0
    %v343 = vadd.f32 %v104, %v339
    %v344 = vadd.f32 %v105, %v340
    %v345 = vadd.f32 %v106, %v341
    %v346 = vadd.f32 %v107, %v342
    %347 = vrot.lane.b32.xlu0 %v343, 2
    %v348 = vpop.permute.xlu0 %347
    %349 = vrot.lane.b32.xlu0 %v344, 2
    %v350 = vpop.permute.xlu0 %349
    %351 = vrot.lane.b32.xlu0 %v345, 2
    %v352 = vpop.permute.xlu0 %351
    %353 = vrot.lane.b32.xlu0 %v346, 2
    %v354 = vpop.permute.xlu0 %353
    %vm355 = vcmp.lt.s32.totalorder %v314, 2
    %v356 = vsel %vm355, %v352, %v354
    %v357 = vsel %vm355, %v350, %v352
    %v358 = vsel %vm355, %v348, %v350
    %v359 = vsel %vm355, %v354, %v348
    %vm360 = vcmp.ge.s32.totalorder %v318, 2
    %vm361 = vcmp.ge.s32.totalorder %v319, 2
    %vm362 = vcmp.ge.s32.totalorder %v320, 2
    %vm363 = vcmp.ge.s32.totalorder %v321, 2
    %v364 = vsel %vm360, %v359, 0.0
    %v365 = vsel %vm361, %v358, 0.0
    %v366 = vsel %vm362, %v357, 0.0
    %v367 = vsel %vm363, %v356, 0.0
    %v368 = vadd.f32 %v343, %v364
    %v369 = vadd.f32 %v344, %v365
    %v370 = vadd.f32 %v345, %v366
    %v371 = vadd.f32 %v346, %v367
    %372 = vrot.lane.b32.xlu0 %v368, 4
    %v373 = vpop.permute.xlu0 %372
    %374 = vrot.lane.b32.xlu0 %v369, 4
    %v375 = vpop.permute.xlu0 %374
    %376 = vrot.lane.b32.xlu0 %v370, 4
    %v377 = vpop.permute.xlu0 %376
    %378 = vrot.lane.b32.xlu0 %v371, 4
    %v379 = vpop.permute.xlu0 %378
    %vm380 = vcmp.lt.s32.totalorder %v314, 4
    %v381 = vsel %vm380, %v377, %v379
    %v382 = vsel %vm380, %v375, %v377
    %v383 = vsel %vm380, %v373, %v375
    %v384 = vsel %vm380, %v379, %v373
    %vm385 = vcmp.ge.s32.totalorder %v318, 4
    %vm386 = vcmp.ge.s32.totalorder %v319, 4
    %vm387 = vcmp.ge.s32.totalorder %v320, 4
    %vm388 = vcmp.ge.s32.totalorder %v321, 4
    %v389 = vsel %vm385, %v384, 0.0
    %v390 = vsel %vm386, %v383, 0.0
    %v391 = vsel %vm387, %v382, 0.0
    %v392 = vsel %vm388, %v381, 0.0
    %v393 = vadd.f32 %v368, %v389
    %v394 = vadd.f32 %v369, %v390
    %v395 = vadd.f32 %v370, %v391
    %v396 = vadd.f32 %v371, %v392
    %397 = vrot.lane.b32.xlu0 %v393, 8
    %v398 = vpop.permute.xlu0 %397
    %399 = vrot.lane.b32.xlu0 %v394, 8
    %v400 = vpop.permute.xlu0 %399
    %401 = vrot.lane.b32.xlu0 %v395, 8
    %v402 = vpop.permute.xlu0 %401
    %403 = vrot.lane.b32.xlu0 %v396, 8
    %v404 = vpop.permute.xlu0 %403
    %vm405 = vcmp.lt.s32.totalorder %v314, 8
    %v406 = vsel %vm405, %v402, %v404
    %v407 = vsel %vm405, %v400, %v402
    %v408 = vsel %vm405, %v398, %v400
    %v409 = vsel %vm405, %v404, %v398
    %vm410 = vcmp.ge.s32.totalorder %v318, 8
    %vm411 = vcmp.ge.s32.totalorder %v319, 8
    %vm412 = vcmp.ge.s32.totalorder %v320, 8
    %vm413 = vcmp.ge.s32.totalorder %v321, 8
    %v414 = vsel %vm410, %v409, 0.0
    %v415 = vsel %vm411, %v408, 0.0
    %v416 = vsel %vm412, %v407, 0.0
    %v417 = vsel %vm413, %v406, 0.0
    %v418 = vadd.f32 %v393, %v414
    %v419 = vadd.f32 %v394, %v415
    %v420 = vadd.f32 %v395, %v416
    %v421 = vadd.f32 %v396, %v417
    %422 = vrot.lane.b32.xlu0 %v418, 16
    %v423 = vpop.permute.xlu0 %422
    %424 = vrot.lane.b32.xlu0 %v419, 16
    %v425 = vpop.permute.xlu0 %424
    %426 = vrot.lane.b32.xlu0 %v420, 16
    %v427 = vpop.permute.xlu0 %426
    %428 = vrot.lane.b32.xlu0 %v421, 16
    %v429 = vpop.permute.xlu0 %428
    %vm430 = vcmp.lt.s32.totalorder %v314, 16
    %v431 = vsel %vm430, %v427, %v429
    %v432 = vsel %vm430, %v425, %v427
    %v433 = vsel %vm430, %v423, %v425
    %v434 = vsel %vm430, %v429, %v423
    %vm435 = vcmp.ge.s32.totalorder %v318, 16
    %vm436 = vcmp.ge.s32.totalorder %v319, 16
    %vm437 = vcmp.ge.s32.totalorder %v320, 16
    %vm438 = vcmp.ge.s32.totalorder %v321, 16
    %v439 = vsel %vm435, %v434, 0.0
    %v440 = vsel %vm436, %v433, 0.0
    %v441 = vsel %vm437, %v432, 0.0
    %v442 = vsel %vm438, %v431, 0.0
    %v443 = vadd.f32 %v418, %v439
    %v444 = vadd.f32 %v419, %v440
    %v445 = vadd.f32 %v420, %v441
    %v446 = vadd.f32 %v421, %v442
    %447 = vrot.lane.b32.xlu0 %v443, 32
    %v448 = vpop.permute.xlu0 %447
    %449 = vrot.lane.b32.xlu0 %v444, 32
    %v450 = vpop.permute.xlu0 %449
    %451 = vrot.lane.b32.xlu0 %v445, 32
    %v452 = vpop.permute.xlu0 %451
    %453 = vrot.lane.b32.xlu0 %v446, 32
    %v454 = vpop.permute.xlu0 %453
    %vm455 = vcmp.lt.s32.totalorder %v314, 32
    %v456 = vsel %vm455, %v452, %v454
    %v457 = vsel %vm455, %v450, %v452
    %v458 = vsel %vm455, %v448, %v450
    %v459 = vsel %vm455, %v454, %v448
    %vm460 = vcmp.ge.s32.totalorder %v318, 32
    %vm461 = vcmp.ge.s32.totalorder %v319, 32
    %vm462 = vcmp.ge.s32.totalorder %v320, 32
    %vm463 = vcmp.ge.s32.totalorder %v321, 32
    %v464 = vsel %vm460, %v459, 0.0
    %v465 = vsel %vm461, %v458, 0.0
    %v466 = vsel %vm462, %v457, 0.0
    %v467 = vsel %vm463, %v456, 0.0
    %v468 = vadd.f32 %v443, %v464
    %v469 = vadd.f32 %v444, %v465
    %v470 = vadd.f32 %v445, %v466
    %v471 = vadd.f32 %v446, %v467
    %472 = vrot.lane.b32.xlu0 %v468, 64
    %v473 = vpop.permute.xlu0 %472
    %474 = vrot.lane.b32.xlu0 %v469, 64
    %v475 = vpop.permute.xlu0 %474
    %476 = vrot.lane.b32.xlu0 %v470, 64
    %v477 = vpop.permute.xlu0 %476
    %478 = vrot.lane.b32.xlu0 %v471, 64
    %v479 = vpop.permute.xlu0 %478
    %vm480 = vcmp.lt.s32.totalorder %v314, 64
    %v481 = vsel %vm480, %v477, %v479
    %v482 = vsel %vm480, %v475, %v477
    %v483 = vsel %vm480, %v473, %v475
    %v484 = vsel %vm480, %v479, %v473
    %vm485 = vcmp.ge.s32.totalorder %v318, 64
    %vm486 = vcmp.ge.s32.totalorder %v319, 64
    %vm487 = vcmp.ge.s32.totalorder %v320, 64
    %vm488 = vcmp.ge.s32.totalorder %v321, 64
    %v489 = vsel %vm485, %v484, 0.0
    %v490 = vsel %vm486, %v483, 0.0
    %v491 = vsel %vm487, %v482, 0.0
    %v492 = vsel %vm488, %v481, 0.0
    %v493 = vadd.f32 %v468, %v489
    %v494 = vadd.f32 %v469, %v490
    %v495 = vadd.f32 %v470, %v491
    %v496 = vadd.f32 %v471, %v492
    %vm497 = vcmp.ge.s32.totalorder %v314, 128
    %vm498 = vcmp.ge.s32.totalorder %v315, 128
    %vm499 = vcmp.ge.s32.totalorder %v316, 128
    %vm500 = vcmp.ge.s32.totalorder %v317, 128
    %502 = vset.pattern.permute.xlu0 6
    %503 = vperm.xlu0 %502, %v282
    %v504 = vpop.permute.xlu0 %503
    %v506 = vsel %vm497, %v504, 0.0
    %v507 = vsel %vm498, %v504, 0.0
    %v508 = vsel %vm499, %v504, 0.0
    %v509 = vsel %vm500, %v504, 0.0
    %v510 = vadd.f32 %v493, %v506
    %v511 = vadd.f32 %v494, %v507
    %v512 = vadd.f32 %v495, %v508
    %v513 = vadd.f32 %v496, %v509
    %vm514 = vcmp.ge.s32.totalorder %v314, 256
    %vm515 = vcmp.ge.s32.totalorder %v315, 256
    %vm516 = vcmp.ge.s32.totalorder %v316, 256
    %vm517 = vcmp.ge.s32.totalorder %v317, 256
    %518 = vset.pattern.permute.xlu0 7
    %519 = vperm.xlu0 %518, %v282
    %v520 = vpop.permute.xlu0 %519
    %v522 = vsel %vm514, %v520, 0.0
    %v523 = vsel %vm515, %v520, 0.0
    %v524 = vsel %vm516, %v520, 0.0
    %v525 = vsel %vm517, %v520, 0.0
    %v526 = vadd.f32 %v510, %v522
    %v527 = vadd.f32 %v511, %v523
    %v528 = vadd.f32 %v512, %v524
    %v529 = vadd.f32 %v513, %v525
    %vm530 = vcmp.ge.s32.totalorder %v314, 384
    %vm531 = vcmp.ge.s32.totalorder %v315, 384
    %vm532 = vcmp.ge.s32.totalorder %v316, 384
    %vm533 = vcmp.ge.s32.totalorder %v317, 384
    %534 = vset.pattern.permute.xlu0 8
    %535 = vperm.xlu0 %534, %v282
    %v536 = vpop.permute.xlu0 %535
    %v538 = vsel %vm530, %v536, 0.0
    %v539 = vsel %vm531, %v536, 0.0
    %v540 = vsel %vm532, %v536, 0.0
    %v541 = vsel %vm533, %v536, 0.0
    %v542 = vadd.f32 %v526, %v538
    %v543 = vadd.f32 %v527, %v539
    %v544 = vadd.f32 %v528, %v540
    %v545 = vadd.f32 %v529, %v541
    %vm546 = vcmp.lt.s32.totalorder %v314, 400
    %vm547 = vcmp.lt.s32.totalorder %v315, 400
    %vm548 = vcmp.lt.s32.totalorder %v316, 400
    %vm549 = vcmp.lt.s32.totalorder %v317, 400
    %v550 = vand.u32 2147483647, %v542
    %v551 = vand.u32 2147483647, %v543
    %v552 = vand.u32 2147483647, %v544
    %v553 = vand.u32 2147483647, %v545
    %v554 = vsel %vm546, %v550, 0.0
    %v555 = vsel %vm547, %v551, 0.0
    %v556 = vsel %vm548, %v552, 0.0
    %v557 = vsel %vm549, %v553, 0.0
    %v558 = vadd.f32 %v554, %v555
    %v559 = vadd.f32 %v558, %v556
    %v560 = vadd.f32 %v559, %v557
    %561 = vadd.xlane.f32.xlu0 %v560
    %v562 = vpop.xlane.xlu0 %561
    %v563 = vrot.slane %v562, 4
    %v564 = vadd.f32 %v562, %v563
    %v565 = vrot.slane %v564, 2
    %v566 = vadd.f32 %v564, %v565
    %v567 = vrot.slane %v566, 1
    %v568 = vadd.f32 %v566, %v567
    %s569 = vtos %v568
    %s570 = smul.f32 %s569, 0.0003125
    %v571 = vrcp.pop %v272
    %v572 = vmul.f32 %v272, %v571
    %v573 = vsub.f32 2.0, %v572
    %v574 = vmul.f32 %v571, %v573
    %576 = vrot.lane.b32.xlu0 %v574, 1
    %v577 = vpop.permute.xlu0 %576
    %v579 = vmul.f32 %v272, %v577
    %580 = vrot.lane.b32.xlu0 %v574, 2
    %v581 = vpop.permute.xlu0 %580
    %v583 = vmul.f32 %v272, %v581
    %584 = vrot.lane.b32.xlu0 %v574, 3
    %v585 = vpop.permute.xlu0 %584
    %v587 = vmul.f32 %v272, %v585
    %588 = vrot.lane.b32.xlu0 %v574, 4
    %v589 = vpop.permute.xlu0 %588
    %v591 = vmul.f32 %v272, %v589
    %v592 = vmul.f32 %v579, %v579
    %594 = vrot.lane.b32.xlu0 %v592, 1
    %v595 = vpop.permute.xlu0 %594
    %v597 = vsub.f32 %v583, %v595
    %v598 = vmul.f32 %v579, 3.0
    %600 = vrot.lane.b32.xlu0 %v583, 127
    %v601 = vpop.permute.xlu0 %600
    %v603 = vmul.f32 %v598, %v601
    %605 = vrot.lane.b32.xlu0 %v603, 2
    %v606 = vpop.permute.xlu0 %605
    %v608 = vsub.f32 %v587, %v606
    %v609 = vmul.f32 %v579, 2.0
    %v610 = vmul.f32 %v609, %v592
    %612 = vrot.lane.b32.xlu0 %v610, 2
    %v613 = vpop.permute.xlu0 %612
    %v615 = vadd.f32 %v608, %v613
    %v616 = vmul.f32 %v579, 4.0
    %618 = vrot.lane.b32.xlu0 %v587, 126
    %v619 = vpop.permute.xlu0 %618
    %v621 = vmul.f32 %v616, %v619
    %623 = vrot.lane.b32.xlu0 %v621, 3
    %v624 = vpop.permute.xlu0 %623
    %v626 = vsub.f32 %v591, %v624
    %v627 = vmul.f32 %v592, 6.0
    %v628 = vmul.f32 %v627, %v601
    %630 = vrot.lane.b32.xlu0 %v628, 3
    %v631 = vpop.permute.xlu0 %630
    %v633 = vadd.f32 %v626, %v631
    %v634 = vmul.f32 %v592, 3.0
    %v635 = vmul.f32 %v634, %v592
    %637 = vrot.lane.b32.xlu0 %v635, 3
    %v638 = vpop.permute.xlu0 %637
    %v640 = vsub.f32 %v633, %v638
    %v641 = vmax.f32 %v597, 1e-12
    %v642 = vrcp.pop %v641
    %v643 = vmul.f32 %v641, %v642
    %v644 = vsub.f32 2.0, %v643
    %v645 = vmul.f32 %v642, %v644
    %647 = vrot.lane.b32.xlu0 %v645, 1
    %v648 = vpop.permute.xlu0 %647
    %v650 = vmul.f32 %v615, %v648
    %v651 = vrsqrt.pop %v641
    %653 = vrot.lane.b32.xlu0 %v651, 1
    %v654 = vpop.permute.xlu0 %653
    %v656 = vmul.f32 %v650, %v654
    %657 = vrot.lane.b32.xlu0 %v645, 2
    %v658 = vpop.permute.xlu0 %657
    %v660 = vmul.f32 %v640, %v658
    %v661 = vmul.f32 %v660, %v658
    %663 = vrot.lane.b32.xlu0 %v579, 1
    %v664 = vpop.permute.xlu0 %663
    %v666 = vsub.f32 %v39, %v664
    %v667 = vand.u32 2147483647, %v666
    %669 = vrot.lane.b32.xlu0 %v597, 1
    %v670 = vpop.permute.xlu0 %669
    %v672 = vsub.f32 %v39, %v670
    %v673 = vand.u32 2147483647, %v672
    %675 = vrot.lane.b32.xlu0 %v673, 127
    %v676 = vpop.permute.xlu0 %675
    %v678 = vadd.f32 %v667, %v676
    %680 = vrot.lane.b32.xlu0 %v656, 1
    %v681 = vpop.permute.xlu0 %680
    %v683 = vsub.f32 %v39, %v681
    %v684 = vand.u32 2147483647, %v683
    %686 = vrot.lane.b32.xlu0 %v684, 126
    %v687 = vpop.permute.xlu0 %686
    %v689 = vadd.f32 %v678, %v687
    %691 = vrot.lane.b32.xlu0 %v661, 1
    %v692 = vpop.permute.xlu0 %691
    %v694 = vsub.f32 %v39, %v692
    %v695 = vand.u32 2147483647, %v694
    %697 = vrot.lane.b32.xlu0 %v695, 125
    %v698 = vpop.permute.xlu0 %697
    %v700 = vadd.f32 %v689, %v698
    %702 = vrot.lane.b32.xlu0 %v272, 1
    %v703 = vpop.permute.xlu0 %702
    %v705 = vsub.f32 %v39, %v703
    %v706 = vand.u32 2147483647, %v705
    %708 = vrot.lane.b32.xlu0 %v706, 124
    %v709 = vpop.permute.xlu0 %708
    %v711 = vadd.f32 %v700, %v709
    %713 = vrot.lane.b32.xlu0 %v711, 126
    %v714 = vpop.permute.xlu0 %713
    %v716 = vsel %vm285, %v714, 0.0
    %717 = vadd.xlane.f32.xlu0 %v716
    %v718 = vpop.xlane.xlu0 %717
    %v719 = vrot.slane %v718, 4
    %v720 = vadd.f32 %v718, %v719
    %v721 = vrot.slane %v720, 2
    %v722 = vadd.f32 %v720, %v721
    %v723 = vrot.slane %v722, 1
    %v724 = vadd.f32 %v722, %v723
    %s725 = vtos %v724
    %s726 = smul.f32 %s725, 0.025
    %s727 = smul.f32 %s312, 0.05
    %s728 = sadd.f32 %s296, %s727
    %s729 = smul.f32 %s570, 0.005
    %s730 = sadd.f32 %s728, %s729
    %s731 = smul.f32 %s726, 0.15
    %s732 = sadd.f32 %s730, %s731
    %v733 = vstv %s732
    %734 = vst [vmem:[%s4] sm:$0xff] %v733
    // Predicated region
    $region22: #{dos_loss.1} parent=1 // pred_check
      _
    $region23: #{dos_loss.1} parent=1 // pred_check_branch
      %736 = sbr.rel (0) target = $region25
    $region24: #{dos_loss.1} parent=1 // pred_region
      _
    $region25: #{dos_loss.1} parent=1 // pred_fallthru
      _
    // Predicated region
    $region26: #{dos_loss.1} parent=1 // pred_check
      _
    $region27: #{dos_loss.1} parent=1 // pred_check_branch
      %738 = sbr.rel (0) target = $region29
    $region28: #{dos_loss.1} parent=1 // pred_region
      _
    $region29: #{dos_loss.1} parent=1 // pred_fallthru
      _
    %739 = vsyncpa [#allocation3], 1

</llo_original>
